<compile_context>
chip_gen: v5e
topology: v5e:2x2
jax: 0.10.0
libtpu: 0.0.40
codegen_flags: <defaults>
</compile_context>

<pallas_src>
import functools
import math

import jax
import jax.numpy as jnp
import numpy as np
from jax.experimental import pallas as pl
from jax.experimental.pallas import tpu as pltpu

# ---------------- configuration (BERT-style, small) ----------------
B = 2            # batch
S = 8            # sequence length
H = 32           # hidden_size
V = 128          # vocab_size (multiple of 128 -> lane-dense logits)
LN_EPS = 1e-12   # layer_norm_eps


def _erf_f32(z):
    """erf accurate to f32 (Abramowitz & Stegun 7.1.26, |err| < 1.5e-7).

    The reciprocal rides the EUP slot (pl.reciprocal approx + one Newton
    refinement, ~1e-6 rel error) so the polynomial stays off the busy VPU
    divide path; everything else is mul/add/exp/where.
    """
    a1, a2, a3, a4, a5 = (0.254829592, -0.284496736, 1.421413741,
                          -1.453152027, 1.061405429)
    p = 0.3275911
    az = jnp.abs(z)
    d = 1.0 + p * az
    t = pl.reciprocal(d, approx=True)
    t = t * (2.0 - d * t)                       # one Newton step: ~1e-6 rel err
    poly = ((((a5 * t + a4) * t + a3) * t + a2) * t + a1) * t
    e = 1.0 - poly * jnp.exp(-az * az)
    return jnp.where(z < 0, -e, e)


def _mlm_head_kernel(x_ref, wt_ref, wdec_ref, bias_ref, out_ref, *, hidden, eps):
    # x block: (B*S, H) -- the whole problem in one tile (no grid).
    x = x_ref[...].astype(jnp.float32)

    b_t = bias_ref[0:1, 0:hidden]     # transform dense bias        (1, H)
    b_dec = bias_ref[1:2, :]          # folded decoder/shared bias  (1, V)

    # BertPredictionHeadTransform.dense
    h = jnp.dot(x, wt_ref[...], preferred_element_type=jnp.float32) + b_t

    # transform_act_fn: exact (erf-based) GELU, matching torch F.gelu default
    h = 0.5 * h * (1.0 + _erf_f32(h * (1.0 / math.sqrt(2.0))))

    # LayerNorm (biased variance), single-pass statistics; gamma/beta are
    # already folded into wdec/b_dec so only the normalization remains.
    mean = jnp.mean(h, axis=-1, keepdims=True)
    msq = jnp.mean(h * h, axis=-1, keepdims=True)
    h = (h - mean) * jax.lax.rsqrt(msq - mean * mean + eps)

    # BertLMPredictionHead.decoder (gamma-scaled) + folded shared bias.
    logits = (jnp.dot(h, wdec_ref[...], preferred_element_type=jnp.float32)
              + b_dec)

    out_ref[...] = logits.astype(out_ref.dtype)   # (B*S, V): lane-dense store


def prepare_mlm_head_params(raw):
    """One-time parameter folding/packing (hoisted out of the hot path).

    * LayerNorm affine folded into the decoder:
        w_dec' = gamma^T * w_dec
        b_dec' = beta @ w_dec + b_dec
    * b_t (1,H) and b_dec' (1,V) packed into one lane-dense (2, V) slab
      (b_t zero-padded along lanes) -> one small DMA instead of two.
    """
    h = raw["w_t"].shape[0]
    v = raw["w_dec"].shape[1]
    w_dec_f = raw["gamma"].reshape(-1, 1) * raw["w_dec"]       # (H, V)
    b_dec_f = raw["beta"] @ raw["w_dec"] + raw["b_dec"]        # (1, V)
    b_t_pad = jnp.pad(raw["b_t"], ((0, 0), (0, v - h)))        # (1, V)
    biases = jnp.concatenate([b_t_pad, b_dec_f], axis=0)       # (2, V)
    return {"w_t": raw["w_t"], "w_dec": w_dec_f, "biases": biases}


def bert_only_mlm_head(sequence_output, prepared):
    """sequence_output: [B, S, H] -> prediction_scores: [B, S, V] (f32)."""
    b, s, h = sequence_output.shape
    v = prepared["w_dec"].shape[1]

    # Collapse batch*seq in the wrapper (cheap XLA reshape) so the kernel sees
    # a single sublane/lane-friendly 2-D tile. The same single-tile design
    # scales to a few hundred rows per call before a grid would be needed.
    x2d = sequence_output.reshape(b * s, h)

    kernel = functools.partial(_mlm_head_kernel, hidden=h, eps=LN_EPS)
    vmem = functools.partial(pl.BlockSpec, memory_space=pltpu.MemorySpace.VMEM)

    logits2d = pl.pallas_call(
        kernel,
        out_shape=jax.ShapeDtypeStruct((b * s, v), jnp.float32),
        in_specs=[vmem(), vmem(), vmem(), vmem()],
        out_specs=vmem(),
    )(x2d, prepared["w_t"], prepared["w_dec"], prepared["biases"])

    return logits2d.reshape(b, s, v)


# ---------------- pure-JAX reference (unfolded params, for validation) -------
def bert_only_mlm_head_ref(x, p):
    hp = jax.lax.Precision.HIGHEST
    h = jnp.dot(x, p["w_t"], precision=hp) + p["b_t"][0]
    h = 0.5 * h * (1.0 + jax.scipy.special.erf(h / np.sqrt(2.0)))
    mean = jnp.mean(h, axis=-1, keepdims=True)
    var = jnp.mean((h - mean) ** 2, axis=-1, keepdims=True)
    h = (h - mean) / jnp.sqrt(var + LN_EPS)
    h = h * p["gamma"][0] + p["beta"][0]
    return jnp.dot(h, p["w_dec"], precision=hp) + p["b_dec"][0]


# ---------------- main ----------------
if __name__ == "__main__":
    key = jax.random.PRNGKey(0)
    ks = jax.random.split(key, 7)

    # Deterministic parameter init (weights stored transposed: (in, out)).
    raw_params = {
        "w_t": 0.05 * jax.random.normal(ks[0], (H, H), jnp.float32),
        "b_t": 0.05 * jax.random.normal(ks[1], (1, H), jnp.float32),
        "gamma": 1.0 + 0.05 * jax.random.normal(ks[2], (1, H), jnp.float32),
        "beta": 0.05 * jax.random.normal(ks[3], (1, H), jnp.float32),
        "w_dec": 0.05 * jax.random.normal(ks[4], (H, V), jnp.float32),
        "b_dec": 0.05 * jax.random.normal(ks[5], (1, V), jnp.float32),
    }

    sequence_output = jax.random.normal(ks[6], (B, S, H), jnp.float32)

    # One-time param folding/packing (NOT in the hot path).
    prepared = jax.tree_util.tree_map(jax.block_until_ready,
                                      prepare_mlm_head_params(raw_params))

    run = jax.jit(bert_only_mlm_head)
    out = jax.block_until_ready(run(sequence_output, prepared))
    ref = jax.block_until_ready(bert_only_mlm_head_ref(sequence_output,
                                                       raw_params))

    np.testing.assert_allclose(np.asarray(out), np.asarray(ref),
                               rtol=1e-4, atol=1e-5)
    print("KERNEL_OK")
</pallas_src>

<mosaic_0001>
module attributes {stable_mosaic.version = 11 : i64} {
  func.func @_mlm_head_kernel(%arg0: memref<16x32xf32, #tpu.memory_space<vmem>>, %arg1: memref<32x32xf32, #tpu.memory_space<vmem>>, %arg2: memref<32x128xf32, #tpu.memory_space<vmem>>, %arg3: memref<2x128xf32, #tpu.memory_space<vmem>>, %arg4: memref<16x128xf32, #tpu.memory_space<vmem>>) attributes {dimension_semantics = [], scalar_prefetch = 0 : i64, scratch_operands = 0 : i64, tpu.core_type = #tpu.core_type<tc>} {
    %c0 = arith.constant 0 : index
    %c0_0 = arith.constant 0 : index
    %0 = vector.load %arg0[%c0, %c0_0] : memref<16x32xf32, #tpu.memory_space<vmem>>, vector<16x32xf32>
    %c0_1 = arith.constant 0 : index
    %c0_2 = arith.constant 0 : index
    %1 = vector.load %arg3[%c0_1, %c0_2] : memref<2x128xf32, #tpu.memory_space<vmem>>, vector<1x32xf32>
    %c1 = arith.constant 1 : index
    %c0_3 = arith.constant 0 : index
    %2 = vector.load %arg3[%c1, %c0_3] : memref<2x128xf32, #tpu.memory_space<vmem>>, vector<1x128xf32>
    %c0_4 = arith.constant 0 : index
    %c0_5 = arith.constant 0 : index
    %3 = vector.load %arg1[%c0_4, %c0_5] : memref<32x32xf32, #tpu.memory_space<vmem>>, vector<32x32xf32>
    %cst = arith.constant dense<0.000000e+00> : vector<16x32xf32>
    %4 = tpu.matmul %0, %3, %cst {dimension_numbers = #tpu.dot_dimension_numbers<[1], [0], [0], [1], [0, 0, 1, 1], [], []>} : vector<16x32xf32>, vector<32x32xf32>, vector<16x32xf32> -> vector<16x32xf32>
    %5 = vector.broadcast %1 : vector<1x32xf32> to vector<16x32xf32>
    %6 = arith.addf %4, %5 : vector<16x32xf32>
    %cst_6 = arith.constant 5.000000e-01 : f32
    %7 = vector.broadcast %cst_6 : f32 to vector<16x32xf32>
    %8 = arith.mulf %7, %6 : vector<16x32xf32>
    %cst_7 = arith.constant 0.707106769 : f32
    %9 = vector.broadcast %cst_7 : f32 to vector<16x32xf32>
    %10 = arith.mulf %6, %9 : vector<16x32xf32>
    %11 = math.absf %10 : vector<16x32xf32>
    %cst_8 = arith.constant 0.327591091 : f32
    %12 = vector.broadcast %cst_8 : f32 to vector<16x32xf32>
    %13 = arith.mulf %12, %11 : vector<16x32xf32>
    %cst_9 = arith.constant 1.000000e+00 : f32
    %14 = vector.broadcast %cst_9 : f32 to vector<16x32xf32>
    %15 = arith.addf %14, %13 : vector<16x32xf32>
    %16 = tpu.reciprocal %15 {approx = true} : vector<16x32xf32> -> vector<16x32xf32>
    %17 = arith.mulf %15, %16 : vector<16x32xf32>
    %cst_10 = arith.constant 2.000000e+00 : f32
    %18 = vector.broadcast %cst_10 : f32 to vector<16x32xf32>
    %19 = arith.subf %18, %17 : vector<16x32xf32>
    %20 = arith.mulf %16, %19 : vector<16x32xf32>
    %cst_11 = arith.constant 1.06140542 : f32
    %21 = vector.broadcast %cst_11 : f32 to vector<16x32xf32>
    %22 = arith.mulf %21, %20 : vector<16x32xf32>
    %cst_12 = arith.constant -1.45315206 : f32
    %23 = vector.broadcast %cst_12 : f32 to vector<16x32xf32>
    %24 = arith.addf %22, %23 : vector<16x32xf32>
    %25 = arith.mulf %24, %20 : vector<16x32xf32>
    %cst_13 = arith.constant 1.42141378 : f32
    %26 = vector.broadcast %cst_13 : f32 to vector<16x32xf32>
    %27 = arith.addf %25, %26 : vector<16x32xf32>
    %28 = arith.mulf %27, %20 : vector<16x32xf32>
    %cst_14 = arith.constant -0.284496725 : f32
    %29 = vector.broadcast %cst_14 : f32 to vector<16x32xf32>
    %30 = arith.addf %28, %29 : vector<16x32xf32>
    %31 = arith.mulf %30, %20 : vector<16x32xf32>
    %cst_15 = arith.constant 0.254829586 : f32
    %32 = vector.broadcast %cst_15 : f32 to vector<16x32xf32>
    %33 = arith.addf %31, %32 : vector<16x32xf32>
    %34 = arith.mulf %33, %20 : vector<16x32xf32>
    %cst_16 = arith.constant 0.000000e+00 : f32
    %35 = vector.broadcast %cst_16 : f32 to vector<16x32xf32>
    %36 = arith.subf %35, %11 : vector<16x32xf32>
    %37 = arith.mulf %36, %11 : vector<16x32xf32>
    %38 = math.exp %37 : vector<16x32xf32>
    %39 = arith.mulf %34, %38 : vector<16x32xf32>
    %cst_17 = arith.constant 1.000000e+00 : f32
    %40 = vector.broadcast %cst_17 : f32 to vector<16x32xf32>
    %41 = arith.subf %40, %39 : vector<16x32xf32>
    %cst_18 = arith.constant 0.000000e+00 : f32
    %42 = vector.broadcast %cst_18 : f32 to vector<16x32xf32>
    %43 = arith.cmpf olt, %10, %42 : vector<16x32xf32>
    %cst_19 = arith.constant 0.000000e+00 : f32
    %44 = vector.broadcast %cst_19 : f32 to vector<16x32xf32>
    %45 = arith.subf %44, %41 : vector<16x32xf32>
    %46 = arith.select %43, %45, %41 : vector<16x32xi1>, vector<16x32xf32>
    %cst_20 = arith.constant 1.000000e+00 : f32
    %47 = vector.broadcast %cst_20 : f32 to vector<16x32xf32>
    %48 = arith.addf %47, %46 : vector<16x32xf32>
    %49 = arith.mulf %8, %48 : vector<16x32xf32>
    %cst_21 = arith.constant dense<0.000000e+00> : vector<16xf32>
    %50 = vector.multi_reduction <add>, %49, %cst_21 [1] : vector<16x32xf32> to vector<16xf32>
    %51 = vector.shape_cast %50 : vector<16xf32> to vector<16x1xf32>
    %cst_22 = arith.constant 3.200000e+01 : f32
    %52 = vector.broadcast %cst_22 : f32 to vector<16x1xf32>
    %53 = arith.divf %51, %52 : vector<16x1xf32>
    %54 = arith.mulf %49, %49 : vector<16x32xf32>
    %cst_23 = arith.constant dense<0.000000e+00> : vector<16xf32>
    %55 = vector.multi_reduction <add>, %54, %cst_23 [1] : vector<16x32xf32> to vector<16xf32>
    %56 = vector.shape_cast %55 : vector<16xf32> to vector<16x1xf32>
    %cst_24 = arith.constant 3.200000e+01 : f32
    %57 = vector.broadcast %cst_24 : f32 to vector<16x1xf32>
    %58 = arith.divf %56, %57 : vector<16x1xf32>
    %59 = vector.broadcast %53 : vector<16x1xf32> to vector<16x32xf32>
    %60 = arith.subf %49, %59 : vector<16x32xf32>
    %61 = arith.mulf %53, %53 : vector<16x1xf32>
    %62 = arith.subf %58, %61 : vector<16x1xf32>
    %cst_25 = arith.constant 9.99999996E-13 : f32
    %63 = vector.broadcast %cst_25 : f32 to vector<16x1xf32>
    %64 = arith.addf %62, %63 : vector<16x1xf32>
    %65 = math.rsqrt %64 : vector<16x1xf32>
    %66 = vector.broadcast %65 : vector<16x1xf32> to vector<16x32xf32>
    %67 = arith.mulf %60, %66 : vector<16x32xf32>
    %c0_26 = arith.constant 0 : index
    %c0_27 = arith.constant 0 : index
    %68 = vector.load %arg2[%c0_26, %c0_27] : memref<32x128xf32, #tpu.memory_space<vmem>>, vector<32x128xf32>
    %cst_28 = arith.constant dense<0.000000e+00> : vector<16x128xf32>
    %69 = tpu.matmul %67, %68, %cst_28 {dimension_numbers = #tpu.dot_dimension_numbers<[1], [0], [0], [1], [0, 0, 1, 1], [], []>} : vector<16x32xf32>, vector<32x128xf32>, vector<16x128xf32> -> vector<16x128xf32>
    %70 = vector.broadcast %2 : vector<1x128xf32> to vector<16x128xf32>
    %71 = arith.addf %69, %70 : vector<16x128xf32>
    %c0_29 = arith.constant 0 : index
    %c0_30 = arith.constant 0 : index
    %72 = vector.load %arg4[%c0_29, %c0_30] : memref<16x128xf32, #tpu.memory_space<vmem>>, vector<16x128xf32>
    tpu.vector_store %arg4[%c0_29, %c0_30], %71 {strides = array<i32>} : memref<16x128xf32, #tpu.memory_space<vmem>>, vector<16x128xf32>,
    return
  }
}

</mosaic_0001>

<llo_original>
// kernel: bert_only_mlm_head.1
$region0: #{bert_only_mlm_head.1}
  #allocation0 [shape = 'u32[]', space=smem, size = 0x4, offset = 0x4, fixed_abs, tag = 'smem constant byte address 0x4 - core index']
  #allocation1 [shape = 'u32[72,128]{1,0:T(1,128)}', space=vmem, size = 0x9000, scoped, tag = 'internal scratch']
  %s0 = inlined_call_operand.hbm [shape: f32[16,32], index: 0, kind: input, shape index: {}]
  %s1 = inlined_call_operand.hbm [shape: f32[32,32], index: 1, kind: input, shape index: {}]
  %s2 = inlined_call_operand.hbm [shape: f32[32,128], index: 2, kind: input, shape index: {}]
  %s3 = inlined_call_operand.hbm [shape: f32[2,128], index: 3, kind: input, shape index: {}]
  %s4 = inlined_call_operand.hbm [shape: f32[16,128], index: 4, kind: output, shape index: {}]
  %s5 = sld [smem:[#allocation0]]
  $region42: #{bert_only_mlm_head.1} parent=0
    _
  %s7 = ssub.s32 1, %s5
  %s8 = scalar_select 0, %s7, %s5
  $region1: #{bert_only_mlm_head.1} parent=0
    #allocation2 [shape = 'u8[8192]{0}', space=vmem, size = 0x2000, scoped, tag = 'input window, operand 0, single buffered']
    #allocation3 [shape = 's32[1]{0}', space=sflag, size = 0x4, scoped, tag = 'scoped memory for bert_only_mlm_head.1']
    #allocation4 [shape = 's32[1]{0}', space=sflag, size = 0x4, scoped, tag = 'scoped memory for bert_only_mlm_head.1']
    #allocation5 [shape = 'u8[16384]{0}', space=vmem, size = 0x4000, scoped, tag = 'input window, operand 1, single buffered']
    #allocation6 [shape = 's32[1]{0}', space=sflag, size = 0x4, scoped, tag = 'scoped memory for bert_only_mlm_head.1']
    #allocation7 [shape = 'u8[16384]{0}', space=vmem, size = 0x4000, scoped, tag = 'input window, operand 2, single buffered']
    #allocation8 [shape = 'u8[1024]{0}', space=vmem, size = 0x400, scoped, tag = 'input window, operand 3, single buffered']
    #allocation9 [shape = 's32[1]{0}', space=sflag, size = 0x4, scoped, tag = 'scoped memory for bert_only_mlm_head.1']
    #allocation10 [shape = 'u8[8192]{0}', space=vmem, size = 0x2000, scoped, tag = 'output window, operand 0, single buffered']
    %9 = vsyncpa [#allocation3], 0
    %10 = vsyncpa [#allocation6], 0
    %11 = vsyncpa [#allocation9], 0
    %12 = vsyncpa [#allocation4], 0
    // Predicated region
    $region2: #{bert_only_mlm_head.1} parent=1 // pred_check
      _
    $region3: #{bert_only_mlm_head.1} parent=1 // pred_check_branch
      %14 = sbr.rel (0) target = $region5
    $region4: #{bert_only_mlm_head.1} parent=1 // pred_region
      %16 = vsyncadd [#allocation3], 0
      %s17 = sshll.u32 %s0, 4
      %s18 = int_to_ptr.hbm [resolvable:$true] %s17
      %s19 = sshll.u32 [#allocation2], 4
      %s20 = int_to_ptr.vmem [resolvable:$true] %s19
      %25 = dma.hbm_to_vmem [thread:$0]  %s18, 256, %s20, [#allocation3], 128, 128, 8
    $region5: #{bert_only_mlm_head.1} parent=1 // pred_fallthru
      _
    // Predicated region
    $region6: #{bert_only_mlm_head.1} parent=1 // pred_check
      _
    $region7: #{bert_only_mlm_head.1} parent=1 // pred_check_branch
      %27 = sbr.rel (0) target = $region9
    $region8: #{bert_only_mlm_head.1} parent=1 // pred_region
      %29 = vsyncadd [#allocation6], 0
      %s30 = sshll.u32 %s1, 4
      %s31 = int_to_ptr.hbm [resolvable:$true] %s30
      %s32 = sshll.u32 [#allocation5], 4
      %s33 = int_to_ptr.vmem [resolvable:$true] %s32
      %38 = dma.hbm_to_vmem [thread:$0]  %s31, 512, %s33, [#allocation6], 128, 128, 8
    $region9: #{bert_only_mlm_head.1} parent=1 // pred_fallthru
      _
    // Predicated region
    $region10: #{bert_only_mlm_head.1} parent=1 // pred_check
      _
    $region11: #{bert_only_mlm_head.1} parent=1 // pred_check_branch
      %40 = sbr.rel (0) target = $region13
    $region12: #{bert_only_mlm_head.1} parent=1 // pred_region
      %42 = vsyncadd [#allocation6], 0
      %s43 = sshll.u32 %s2, 4
      %s44 = int_to_ptr.hbm [resolvable:$true] %s43
      %s45 = sshll.u32 [#allocation7], 4
      %s46 = int_to_ptr.vmem [resolvable:$true] %s45
      %51 = dma.hbm_to_vmem [thread:$0]  %s44, 512, %s46, [#allocation6], 128, 128, 8
    $region13: #{bert_only_mlm_head.1} parent=1 // pred_fallthru
      _
    // Predicated region
    $region14: #{bert_only_mlm_head.1} parent=1 // pred_check
      _
    $region15: #{bert_only_mlm_head.1} parent=1 // pred_check_branch
      %53 = sbr.rel (0) target = $region17
    $region16: #{bert_only_mlm_head.1} parent=1 // pred_region
      %55 = vsyncadd [#allocation9], 0
      %s57 = sshll.u32 %s3, 4
      %s58 = int_to_ptr.hbm [resolvable:$true] %s57
      %s59 = sshll.u32 [#allocation8], 4
      %s60 = int_to_ptr.vmem [resolvable:$true] %s59
      %62 = dma.hbm_to_vmem [thread:$0]  %s58, 32, %s60, [#allocation9]
    $region17: #{bert_only_mlm_head.1} parent=1 // pred_fallthru
      _
    // Predicated region
    $region18: #{bert_only_mlm_head.1} parent=1 // pred_check
      _
    $region19: #{bert_only_mlm_head.1} parent=1 // pred_check_branch
      %64 = sbr.rel (0) target = $region21
    $region20: #{bert_only_mlm_head.1} parent=1 // pred_region
      %66 = dma.done [#allocation3], 256
    $region21: #{bert_only_mlm_head.1} parent=1 // pred_fallthru
      _
    // Predicated region
    $region22: #{bert_only_mlm_head.1} parent=1 // pred_check
      _
    $region23: #{bert_only_mlm_head.1} parent=1 // pred_check_branch
      %68 = sbr.rel (0) target = $region25
    $region24: #{bert_only_mlm_head.1} parent=1 // pred_region
      %70 = dma.done [#allocation6], 512
    $region25: #{bert_only_mlm_head.1} parent=1 // pred_fallthru
      _
    // Predicated region
    $region26: #{bert_only_mlm_head.1} parent=1 // pred_check
      _
    $region27: #{bert_only_mlm_head.1} parent=1 // pred_check_branch
      %72 = sbr.rel (0) target = $region29
    $region28: #{bert_only_mlm_head.1} parent=1 // pred_region
      %74 = dma.done [#allocation6], 512
    $region29: #{bert_only_mlm_head.1} parent=1 // pred_fallthru
      _
    // Predicated region
    $region30: #{bert_only_mlm_head.1} parent=1 // pred_check
      _
    $region31: #{bert_only_mlm_head.1} parent=1 // pred_check_branch
      %76 = sbr.rel (0) target = $region33
    $region32: #{bert_only_mlm_head.1} parent=1 // pred_region
      %78 = dma.done [#allocation9], 32
    $region33: #{bert_only_mlm_head.1} parent=1 // pred_fallthru
      _
    %v79 = vld [vmem:[#allocation2] sm:$0xff]
    %v80 = vld [vmem:[#allocation2 + $0x8] sm:$0xff]
    %v81 = vld [vmem:[#allocation8] sm:$0x1]
    %v82 = vld [vmem:[#allocation8 + $0x1] sm:$0x1]
    %v83 = vld [vmem:[#allocation5] sm:$0xff]
    %v84 = vld [vmem:[#allocation5 + $0x8] sm:$0xff]
    %v85 = vld [vmem:[#allocation5 + $0x10] sm:$0xff]
    %v86 = vld [vmem:[#allocation5 + $0x18] sm:$0xff]
    %v87 = vperm.slane %v81, 0
    %vm88 = vcmask 261120
    %v90 = vsel %vm88, %v79, 0
    %v93 = vsel %vm88, %v80, 0
    %95 = vmatpush.msra.mxu0 0.0
    %96 = vmatpush.msra.mxu0 0.0
    %97 = vmatpush.msra.mxu0 0.0
    %98 = vmatpush.msra.mxu0 0.0
    %99 = vmatpush.msra.mxu0 0.0
    %100 = vmatpush.msra.mxu0 0.0
    %101 = vmatpush.msra.mxu0 0.0
    %102 = vmatpush.msra.mxu0 0.0
    %103 = vmatpush.msra.mxu0 0.0
    %104 = vmatpush.msra.mxu0 0.0
    %105 = vmatpush.msra.mxu0 0.0
    %106 = vmatpush.msra.mxu0 0.0
    %107 = vmatpush.msra.mxu0 %v86
    %108 = vmatpush.msra.mxu0 %v85
    %109 = vmatpush.msra.mxu0 %v84
    %110 = vmatpush.msra.mxu0 %v83
    %111 = vmatmul.f32.gmra.mxu0 %v90
    %v112 = vpop.f32.mrf.mxu0
    %v113 = vadd.f32 %v87, %v112
    %114 = vmatmul.f32.gmra.mxu0 %v93
    %v115 = vpop.f32.mrf.mxu0
    %v116 = vadd.f32 %v87, %v115
    %117 = vdwg.mxu0
    %v118 = vmul.f32 %v113, 0.5
    %v119 = vmul.f32 %v116, 0.5
    %v120 = vmul.f32 %v113, 0.70710677
    %v121 = vmul.f32 %v116, 0.70710677
    %v122 = vand.u32 2147483647, %v120
    %v123 = vand.u32 2147483647, %v121
    %v124 = vmul.f32 %v122, 0.3275911
    %v125 = vmul.f32 %v123, 0.3275911
    %v126 = vadd.f32 %v124, 1.0
    %v127 = vadd.f32 %v125, 1.0
    %v128 = vrcp.pop %v126
    %v129 = vrcp.pop %v127
    %v130 = vmul.f32 %v126, %v128
    %v131 = vmul.f32 %v127, %v129
    %v132 = vsub.f32 2.0, %v130
    %v133 = vsub.f32 2.0, %v131
    %v134 = vmul.f32 %v128, %v132
    %v135 = vmul.f32 %v129, %v133
    %v136 = vmul.f32 %v134, 1.0614054
    %v137 = vmul.f32 %v135, 1.0614054
    %v138 = vadd.f32 %v136, -1.4531521
    %v139 = vadd.f32 %v137, -1.4531521
    %v140 = vmul.f32 %v138, %v134
    %v141 = vmul.f32 %v139, %v135
    %v142 = vadd.f32 %v140, 1.4214138
    %v143 = vadd.f32 %v141, 1.4214138
    %v144 = vmul.f32 %v142, %v134
    %v145 = vmul.f32 %v143, %v135
    %v146 = vadd.f32 %v144, -0.28449672
    %v147 = vadd.f32 %v145, -0.28449672
    %v148 = vmul.f32 %v146, %v134
    %v149 = vmul.f32 %v147, %v135
    %v150 = vadd.f32 %v148, 0.2548296
    %v151 = vadd.f32 %v149, 0.2548296
    %v152 = vmul.f32 %v150, %v134
    %v153 = vmul.f32 %v151, %v135
    %v154 = vsub.f32 0.0, %v122
    %v155 = vsub.f32 0.0, %v123
    %v156 = vmul.f32 %v154, %v122
    %v157 = vmul.f32 %v155, %v123
    %v158 = vmul.f32 %v156, 1.442695
    %v159 = vpow.pop %v158
    %v160 = vmul.f32 %v157, 1.442695
    %v161 = vpow.pop %v160
    %v162 = vmul.f32 %v152, %v159
    %v163 = vmul.f32 %v153, %v161
    %v164 = vsub.f32 1.0, %v162
    %v165 = vsub.f32 1.0, %v163
    %vm166 = vcmp.lt.f32.partialorder %v120, 0.0
    %vm167 = vcmp.lt.f32.partialorder %v121, 0.0
    %v168 = vsub.f32 0.0, %v164
    %v169 = vsub.f32 0.0, %v165
    %v170 = vsel %vm166, %v168, %v164
    %v171 = vsel %vm167, %v169, %v165
    %v172 = vadd.f32 %v170, 1.0
    %v173 = vadd.f32 %v171, 1.0
    %v174 = vmul.f32 %v118, %v172
    %v175 = vmul.f32 %v119, %v173
    %v176 = vsel %vm88, %v174, 0.0
    %177 = vadd.xlane.f32.xlu0 %v176
    %v178 = vpop.xlane.xlu0 %177
    %v179 = vsel %vm88, %v175, 0.0
    %180 = vadd.xlane.f32.xlu0 %v179
    %v181 = vpop.xlane.xlu0 %180
    %v182 = vrcp.pop 32.0
    %v183 = vmul.f32 32.0, %v182
    %v184 = vsub.f32 1.0, %v183
    %v185 = vmul.f32 %v182, %v184
    %v186 = vadd.f32 %v182, %v185
    %vm187 = vweird.f32 %v182
    %v188 = vsel %vm187, %v182, %v186
    %v189 = vmul.f32 %v178, %v188
    %v190 = vmul.f32 %v181, %v188
    %v191 = vmul.f32 %v174, %v174
    %v192 = vmul.f32 %v175, %v175
    %v193 = vsel %vm88, %v191, 0.0
    %194 = vadd.xlane.f32.xlu0 %v193
    %v195 = vpop.xlane.xlu0 %194
    %v196 = vsel %vm88, %v192, 0.0
    %197 = vadd.xlane.f32.xlu0 %v196
    %v198 = vpop.xlane.xlu0 %197
    %v199 = vmul.f32 %v195, %v188
    %v200 = vmul.f32 %v198, %v188
    %v201 = vsub.f32 %v174, %v189
    %v202 = vsub.f32 %v175, %v190
    %v203 = vmul.f32 %v189, %v189
    %v204 = vmul.f32 %v190, %v190
    %v205 = vsub.f32 %v199, %v203
    %v206 = vsub.f32 %v200, %v204
    %v207 = vadd.f32 %v205, 1e-12
    %v208 = vadd.f32 %v206, 1e-12
    %v209 = vrsqrt.pop %v207
    %v210 = vmul.f32 %v209, %v207
    %v211 = vmul.f32 %v210, %v209
    %v212 = vmul.f32 0.5, %v211
    %v213 = vsub.f32 1.5, %v212
    %v214 = vmul.f32 %v209, %v213
    %vm215 = vweird.f32 %v207
    %vm216 = vweird.f32 %v209
    %vm217 = vmor %vm215, %vm216
    %v218 = vsel %vm217, %v209, %v214
    %v219 = vrsqrt.pop %v208
    %v220 = vmul.f32 %v219, %v208
    %v221 = vmul.f32 %v220, %v219
    %v222 = vmul.f32 0.5, %v221
    %v223 = vsub.f32 1.5, %v222
    %v224 = vmul.f32 %v219, %v223
    %vm225 = vweird.f32 %v208
    %vm226 = vweird.f32 %v219
    %vm227 = vmor %vm225, %vm226
    %v228 = vsel %vm227, %v219, %v224
    %v229 = vmul.f32 %v201, %v218
    %v230 = vmul.f32 %v202, %v228
    %v231 = vld [vmem:[#allocation7] sm:$0xff]
    %v232 = vld [vmem:[#allocation7 + $0x8] sm:$0xff]
    %v233 = vld [vmem:[#allocation7 + $0x10] sm:$0xff]
    %v234 = vld [vmem:[#allocation7 + $0x18] sm:$0xff]
    %v235 = vperm.slane %v82, 0
    %v237 = vsel %vm88, %v229, 0
    %v240 = vsel %vm88, %v230, 0
    %242 = vmatpush.msra.mxu0 0.0
    %243 = vmatpush.msra.mxu0 0.0
    %244 = vmatpush.msra.mxu0 0.0
    %245 = vmatpush.msra.mxu0 0.0
    %246 = vmatpush.msra.mxu0 0.0
    %247 = vmatpush.msra.mxu0 0.0
    %248 = vmatpush.msra.mxu0 0.0
    %249 = vmatpush.msra.mxu0 0.0
    %250 = vmatpush.msra.mxu0 0.0
    %251 = vmatpush.msra.mxu0 0.0
    %252 = vmatpush.msra.mxu0 0.0
    %253 = vmatpush.msra.mxu0 0.0
    %254 = vmatpush.msra.mxu0 %v234
    %255 = vmatpush.msra.mxu0 %v233
    %256 = vmatpush.msra.mxu0 %v232
    %257 = vmatpush.msra.mxu0 %v231
    %258 = vmatmul.f32.gmra.mxu0 %v237
    %v259 = vpop.f32.mrf.mxu0
    %v260 = vadd.f32 %v235, %v259
    %261 = vmatmul.f32.gmra.mxu0 %v240
    %v262 = vpop.f32.mrf.mxu0
    %v263 = vadd.f32 %v235, %v262
    %264 = vdwg.mxu0
    %265 = vst [vmem:[#allocation10] sm:$0xff] %v260
    %266 = vst [vmem:[#allocation10 + $0x8] sm:$0xff] %v263
    // Predicated region
    $region34: #{bert_only_mlm_head.1} parent=1 // pred_check
      _
    $region35: #{bert_only_mlm_head.1} parent=1 // pred_check_branch
      %268 = sbr.rel (0) target = $region37
    $region36: #{bert_only_mlm_head.1} parent=1 // pred_region
      %270 = vsyncadd [#allocation4], 0
      %s271 = sshll.u32 [#allocation10], 4
      %s272 = int_to_ptr.vmem [resolvable:$true] %s271
      %s273 = sshll.u32 %s4, 4
      %s274 = int_to_ptr.hbm [resolvable:$true] %s273
      %279 = dma.vmem_to_hbm [thread:$0]  %s272, 256, %s274, [#allocation4], 128, 128, 8
    $region37: #{bert_only_mlm_head.1} parent=1 // pred_fallthru
      _
    // Predicated region
    $region38: #{bert_only_mlm_head.1} parent=1 // pred_check
      _
    $region39: #{bert_only_mlm_head.1} parent=1 // pred_check_branch
      %281 = sbr.rel (0) target = $region41
    $region40: #{bert_only_mlm_head.1} parent=1 // pred_region
      %283 = dma.done [#allocation4], 256
    $region41: #{bert_only_mlm_head.1} parent=1 // pred_fallthru
      _
    %284 = vsyncpa [#allocation3], 1
    %285 = vsyncpa [#allocation6], 1
    %286 = vsyncpa [#allocation9], 1
    %287 = vsyncpa [#allocation4], 1

</llo_original>
